<compile_context>
chip_gen: v7x
topology: tpu7x:2x2x1
jax: 0.10.0
libtpu: 0.0.40
codegen_flags: <defaults>
</compile_context>

<pallas_src>
import math
import numpy as np
import jax
import jax.numpy as jnp
from jax.experimental import pallas as pl
from jax.experimental.pallas import tpu as pltpu

_SQRT1_2 = 0.7071067811865476
_BN_EPS = 1e-3
_VMEM_LIMIT = 64 * 1024 * 1024


def _round_up(x, m):
    return ((x + m - 1) // m) * m


def _erf(x):
    # Rational erf approximation (Numerical Recipes "erfcc").  With the approx EUP
    # reciprocal the end-to-end relative error is ~1e-3 -- well inside the bf16 matmul
    # noise floor and the test tolerance.
    a = jnp.abs(x)
    t = pl.reciprocal(1.0 + 0.5 * a, approx=True)     # EUP slot -> effectively free
    poly = -1.26551223 + t * (1.00002368 + t * (0.37409196 + t * (0.09678418 + t * (
        -0.18628806 + t * (0.27886807 + t * (-1.13520398 + t * (1.48851587 + t * (
            -0.82215223 + t * 0.17087277))))))))
    y = t * jnp.exp(-a * a + poly)
    return jnp.where(x >= 0.0, 1.0 - y, y - 1.0)


def _gelu(z):
    return 0.5 * z * (1.0 + _erf(z * _SQRT1_2))


def _stats_kernel(x_ref, w_ref, stats_ref):
    """Pass 1: per-tile BatchNorm partials (sum, sum-of-squares) of y = x @ w.

    No bias, no row mask: padded rows of x are all-zero and contribute exactly 0 to
    both partials.  The conv result itself is NOT written to HBM; pass 2 recomputes it.
    """
    y = jnp.dot(x_ref[...], w_ref[...], preferred_element_type=jnp.float32)
    stats_ref[0, 0:1, :] = jnp.sum(y, axis=0, keepdims=True)
    stats_ref[0, 1:2, :] = jnp.sum(y * y, axis=0, keepdims=True)


def _conv_bn_gelu_kernel(x_ref, w_ref, scale_ref, shift_ref, o_ref):
    """Pass 2: recompute y = x @ w (f32 acc), folded BN affine + GELU, store bf16."""
    y = jnp.dot(x_ref[...], w_ref[...], preferred_element_type=jnp.float32)
    z = y * scale_ref[...] + shift_ref[...]
    o_ref[...] = _gelu(z).astype(o_ref.dtype)


def upsampler_block(x_nchw, w_t, b, gamma, beta, *, tm=512):
    """UpsamplerBlock forward (training-mode batch statistics, as in module default).

    x_nchw: (N, Cin, H, W); w_t: (Cin, Cout, 3, 3) (PyTorch ConvTranspose2d layout).
    `b` (conv bias) is accepted for interface parity but unused: BatchNorm's mean
    subtraction cancels a pre-BN per-channel constant exactly.
    """
    del b  # cancelled by BatchNorm
    N, Cin, H, W = x_nchw.shape
    Cout = w_t.shape[1]
    OH, OW = 2 * H, 2 * W
    M = N * H * W                    # coarse-grid rows; each yields 4 output pixels
    K = 4 * Cin

    # Pad Cout so the output lane dim 4*Cout_p is a multiple of 128 (unmasked stores,
    # full MXU N tiles).  Cin stays unpadded to avoid inflating input HBM traffic.
    Cout_p = _round_up(Cout, 32)
    CO4 = 4 * Cout_p

    # ---- glue: 4 shifted views of the original input (zero pad bottom/right by 1).
    x_nhwc = jnp.transpose(x_nchw, (0, 2, 3, 1))
    x_pad = jnp.pad(x_nhwc, ((0, 0), (0, 1), (0, 1), (0, 0)))
    views = [x_pad[:, :H, :W, :],    # x[r,   c  ]
             x_pad[:, :H, 1:, :],    # x[r,   c+1]
             x_pad[:, 1:, :W, :],    # x[r+1, c  ]
             x_pad[:, 1:, 1:, :]]    # x[r+1, c+1]
    x_cat = jnp.concatenate([v.reshape(M, Cin) for v in views], axis=1)
    x_cat = x_cat.astype(jnp.bfloat16)                  # bf16 MXU inputs

    # Phase-regrouped ConvTranspose weight: row blocks = the 4 views,
    # column blocks = the 4 output parities (oh%2, ow%2).
    w = w_t.astype(jnp.float32)
    if Cout_p != Cout:
        w = jnp.pad(w, ((0, 0), (0, Cout_p - Cout), (0, 0), (0, 0)))
    z0 = jnp.zeros((Cin, Cout_p), jnp.float32)
    tap = lambda kh, kw: w[:, :, kh, kw]
    w_big = jnp.block([
        # phase(0,0)   (0,1)       (1,0)       (1,1)
        [tap(1, 1),    tap(1, 2),  tap(2, 1),  tap(2, 2)],   # x[r,   c  ]
        [z0,           tap(1, 0),  z0,         tap(2, 0)],   # x[r,   c+1]
        [z0,           z0,         tap(0, 1),  tap(0, 2)],   # x[r+1, c  ]
        [z0,           z0,         z0,         tap(0, 0)],   # x[r+1, c+1]
    ]).astype(jnp.bfloat16)
    # TODO(synk): for very large Cin/Cout tile CO4 with a second grid axis so the (K, CO4)
    # weight block fits v7x's 64 MiB VMEM, and use per-phase matmuls on v5e to skip the
    # structural zero blocks of w_big.

    # ---- M tiling (parallel grid axis; rows kept a multiple of 16 for bf16 sublanes).
    tm = max(16, min(tm, _round_up(M, 16)))
    if _round_up(M, tm) // tm < 2 and M >= 128:
        tm = _round_up((M + 1) // 2, 16)   # >=2 tiles: pipeline overlap + v7x megacore
    Mp = _round_up(M, tm)
    if Mp != M:
        x_cat = jnp.pad(x_cat, ((0, Mp - M), (0, 0)))   # zero rows -> zero stats
    G = Mp // tm

    cparams = pltpu.CompilerParams(
        dimension_semantics=("parallel",),
        vmem_limit_bytes=_VMEM_LIMIT)

    # ---- pass 1: per-tile BN partials only (no conv-output writeback).
    stats = pl.pallas_call(
        _stats_kernel,
        out_shape=jax.ShapeDtypeStruct((G, 2, CO4), jnp.float32),
        grid_spec=pltpu.PrefetchScalarGridSpec(
            num_scalar_prefetch=0,
            grid=(G,),
            in_specs=[
                pl.BlockSpec((tm, K), lambda g: (g, 0)),
                pl.BlockSpec((K, CO4), lambda g: (0, 0)),
            ],
            out_specs=pl.BlockSpec((1, 2, CO4), lambda g: (g, 0, 0)),
        ),
        compiler_params=cparams,
    )(x_cat, w_big)

    # ---- tiny cross-tile / cross-phase BN reduction (training-mode batch stats,
    # biased variance, eps=1e-3), folded into per-channel scale & shift.
    tot = jnp.sum(stats, axis=0).reshape(2, 4, Cout_p).sum(axis=1)     # (2, Cout_p)
    cnt = float(N * OH * OW)
    gamma_p = jnp.pad(gamma.astype(jnp.float32), (0, Cout_p - Cout))
    beta_p = jnp.pad(beta.astype(jnp.float32), (0, Cout_p - Cout))
    mean = tot[0] / cnt
    var = tot[1] / cnt - mean * mean
    scale_c = gamma_p * jax.lax.rsqrt(var + _BN_EPS)
    shift_c = beta_p - mean * scale_c
    scale = jnp.tile(scale_c, 4).reshape(1, CO4)
    shift = jnp.tile(shift_c, 4).reshape(1, CO4)

    # ---- pass 2: recompute conv matmul, fuse BN affine + GELU, store bf16.
    out = pl.pallas_call(
        _conv_bn_gelu_kernel,
        out_shape=jax.ShapeDtypeStruct((Mp, CO4), jnp.bfloat16),
        grid_spec=pltpu.PrefetchScalarGridSpec(
            num_scalar_prefetch=0,
            grid=(G,),
            in_specs=[
                pl.BlockSpec((tm, K), lambda g: (g, 0)),
                pl.BlockSpec((K, CO4), lambda g: (0, 0)),
                pl.BlockSpec((1, CO4), lambda g: (0, 0)),
                pl.BlockSpec((1, CO4), lambda g: (0, 0)),
            ],
            out_specs=pl.BlockSpec((tm, CO4), lambda g: (g, 0)),
        ),
        compiler_params=cparams,
    )(x_cat, w_big, scale, shift)

    # ---- pixel shuffle back to NCHW: (M, 4*Cout_p) -> (N, Cout, 2H, 2W).
    # Done in bf16 (half the shuffle traffic); the f32 cast fuses with the transpose.
    out = out[:M].reshape(N, H, W, 2, 2, Cout_p)[..., :Cout]
    out = out.transpose(0, 5, 1, 3, 2, 4).reshape(N, Cout, OH, OW)
    return out.astype(jnp.float32)


def _reference(x_nchw, w_t, b, gamma, beta):
    # Independent reference: transposed conv via lhs-dilated conv, then BN + exact GELU.
    w_conv = jnp.flip(w_t, axis=(2, 3)).transpose(1, 0, 2, 3)        # (Cout, Cin, 3, 3)
    y = jax.lax.conv_general_dilated(
        x_nchw.astype(jnp.float32), w_conv.astype(jnp.float32),
        window_strides=(1, 1), padding=((1, 2), (1, 2)),
        lhs_dilation=(2, 2), rhs_dilation=(1, 1),
        dimension_numbers=("NCHW", "OIHW", "NCHW"))
    y = y + b.reshape(1, -1, 1, 1)
    mean = jnp.mean(y, axis=(0, 2, 3), keepdims=True)
    var = jnp.mean(jnp.square(y - mean), axis=(0, 2, 3), keepdims=True)
    z = (y - mean) / jnp.sqrt(var + _BN_EPS)
    z = z * gamma.reshape(1, -1, 1, 1) + beta.reshape(1, -1, 1, 1)
    return 0.5 * z * (1.0 + jax.scipy.special.erf(z * _SQRT1_2))


if __name__ == "__main__":
    N, Cin, H, W = 2, 4, 16, 16
    Cout = 8

    key = jax.random.PRNGKey(0)
    k1, k2, k3 = jax.random.split(key, 3)

    # Deterministic synthetic params (he-style scale; bn weight=1, bias=0 as in module init).
    fan_out = Cout * 3 * 3
    w_t = jax.random.normal(k1, (Cin, Cout, 3, 3), jnp.float32) * math.sqrt(2.0 / fan_out)
    b = jax.random.normal(k2, (Cout,), jnp.float32) * 0.1
    gamma = jnp.ones((Cout,), jnp.float32)
    beta = jnp.zeros((Cout,), jnp.float32)

    x = jax.random.normal(k3, (N, Cin, H, W), jnp.float32)

    out = jax.block_until_ready(upsampler_block(x, w_t, b, gamma, beta))
    assert out.shape == (N, Cout, 2 * H, 2 * W), out.shape

    ref = jax.block_until_ready(_reference(x, w_t, b, gamma, beta))
    # Tolerance absorbs bf16 MXU inputs, the bf16 output store and the rational erf.
    assert np.allclose(np.asarray(out), np.asarray(ref), atol=2e-2, rtol=2e-2), (
        float(np.max(np.abs(np.asarray(out) - np.asarray(ref)))))

    print("KERNEL_OK")
</pallas_src>

<mosaic_0001>
module attributes {stable_mosaic.version = 11 : i64} {
  func.func @_stats_kernel(%arg0: i32, %arg1: memref<256x16xbf16, #tpu.memory_space<vmem>>, %arg2: memref<16x128xbf16, #tpu.memory_space<vmem>>, %arg3: memref<1x2x128xf32, #tpu.memory_space<vmem>>) attributes {dimension_semantics = [#tpu.dimension_semantics<parallel>], iteration_bounds = array<i64: 2>, scalar_prefetch = 0 : i64, scratch_operands = 0 : i64, tpu.core_type = #tpu.core_type<tc>, window_params = [{transform_indices = @transform_0, window_bounds = array<i64: 256, 16>}, {pipeline_mode = #tpu.pipeline_mode<synchronous>, transform_indices = @transform_1, window_bounds = array<i64: 16, 128>}, {transform_indices = @transform_2, window_bounds = array<i64: 1, 2, 128>}]} {
    %c0 = arith.constant 0 : index
    %c0_0 = arith.constant 0 : index
    %0 = vector.load %arg1[%c0, %c0_0] : memref<256x16xbf16, #tpu.memory_space<vmem>>, vector<256x16xbf16>
    %c0_1 = arith.constant 0 : index
    %c0_2 = arith.constant 0 : index
    %1 = vector.load %arg2[%c0_1, %c0_2] : memref<16x128xbf16, #tpu.memory_space<vmem>>, vector<16x128xbf16>
    %cst = arith.constant dense<0.000000e+00> : vector<256x128xf32>
    %2 = tpu.matmul %0, %1, %cst {dimension_numbers = #tpu.dot_dimension_numbers<[1], [0], [0], [1], [0, 0, 1, 1], [], []>} : vector<256x16xbf16>, vector<16x128xbf16>, vector<256x128xf32> -> vector<256x128xf32>
    %cst_3 = arith.constant dense<0.000000e+00> : vector<128xf32>
    %3 = vector.multi_reduction <add>, %2, %cst_3 [0] : vector<256x128xf32> to vector<128xf32>
    %4 = vector.shape_cast %3 : vector<128xf32> to vector<1x128xf32>
    %c0_4 = arith.constant 0 : index
    %c0_5 = arith.constant 0 : index
    %c0_6 = arith.constant 0 : index
    %5 = vector.load %arg3[%c0_4, %c0_5, %c0_6] : memref<1x2x128xf32, #tpu.memory_space<vmem>>, vector<1x1x128xf32>
    %6 = vector.shape_cast %5 : vector<1x1x128xf32> to vector<1x128xf32>
    %7 = vector.shape_cast %4 : vector<1x128xf32> to vector<1x1x128xf32>
    tpu.vector_store %arg3[%c0_4, %c0_5, %c0_6], %7 {strides = array<i32>} : memref<1x2x128xf32, #tpu.memory_space<vmem>>, vector<1x1x128xf32>,
    %8 = arith.mulf %2, %2 : vector<256x128xf32>
    %cst_7 = arith.constant dense<0.000000e+00> : vector<128xf32>
    %9 = vector.multi_reduction <add>, %8, %cst_7 [0] : vector<256x128xf32> to vector<128xf32>
    %10 = vector.shape_cast %9 : vector<128xf32> to vector<1x128xf32>
    %c0_8 = arith.constant 0 : index
    %c1 = arith.constant 1 : index
    %c0_9 = arith.constant 0 : index
    %11 = vector.load %arg3[%c0_8, %c1, %c0_9] : memref<1x2x128xf32, #tpu.memory_space<vmem>>, vector<1x1x128xf32>
    %12 = vector.shape_cast %11 : vector<1x1x128xf32> to vector<1x128xf32>
    %13 = vector.shape_cast %10 : vector<1x128xf32> to vector<1x1x128xf32>
    tpu.vector_store %arg3[%c0_8, %c1, %c0_9], %13 {strides = array<i32>} : memref<1x2x128xf32, #tpu.memory_space<vmem>>, vector<1x1x128xf32>,
    return
  }
  func.func @transform_0(%arg0: i32) -> (i32, i32) {
    %c0_i32 = arith.constant 0 : i32
    %c0_i32_0 = arith.constant 0 : i32
    return %arg0, %c0_i32 : i32, i32
  }
  func.func @transform_1(%arg0: i32) -> (i32, i32) {
    %c0_i32 = arith.constant 0 : i32
    %c0_i32_0 = arith.constant 0 : i32
    %c0_i32_1 = arith.constant 0 : i32
    return %c0_i32, %c0_i32_0 : i32, i32
  }
  func.func @transform_2(%arg0: i32) -> (i32, i32, i32) {
    %c0_i32 = arith.constant 0 : i32
    %c0_i32_0 = arith.constant 0 : i32
    %c0_i32_1 = arith.constant 0 : i32
    return %arg0, %c0_i32, %c0_i32_0 : i32, i32, i32
  }
}

</mosaic_0001>

<llo_original>
// kernel: tpu_custom_call.1
$region0: #{tpu_custom_call.1}
  #allocation0 [shape = 'u32[]', space=smem, size = 0x4, offset = 0x4, fixed_abs, tag = 'smem constant byte address 0x4 - core index']
  #allocation1 [shape = 'u32[144,128]{1,0:T(1,128)}', space=vmem, size = 0x12000, scoped, tag = 'internal scratch']
  %s0 = inlined_call_operand.hbm [shape: bf16[512,16], index: 0, kind: input, shape index: {}]
  %s1 = inlined_call_operand.hbm [shape: bf16[16,128], index: 1, kind: input, shape index: {}]
  %s2 = inlined_call_operand.hbm [shape: f32[2,2,128], index: 2, kind: output, shape index: {}]
  %s3 = sld [smem:[#allocation0]]
  $region49: #{tpu_custom_call.1} parent=0
    _
  %s5 = ssub.s32 1, %s3
  %s6 = scalar_select 0, %s5, %s3
  $region1: #{tpu_custom_call.1} parent=0
    #allocation2 [shape = 'u8[131072]{0}', space=vmem, size = 0x20000, scoped, tag = 'input window, operand 0']
    #allocation3 [shape = 's32[2]{0}', space=sflag, size = 0x8, scoped, tag = 'scoped memory for tpu_custom_call.1']
    #allocation4 [shape = 's32[2]{0}', space=sflag, size = 0x8, scoped, tag = 'scoped memory for tpu_custom_call.1']
    #allocation5 [shape = 'u8[4096]{0}', space=vmem, size = 0x1000, scoped, tag = 'input window, operand 1, single buffered']
    #allocation6 [shape = 's32[1]{0}', space=sflag, size = 0x4, scoped, tag = 'scoped memory for tpu_custom_call.1']
    #allocation7 [shape = 'u8[2048]{0}', space=vmem, size = 0x800, scoped, tag = 'output window, operand 0']
    %7 = vsyncpa [#allocation3], 0
    %s8 = scalar_lea.sflag [#allocation3], 1
    %9 = vsyncpa %s8, 0
    %10 = vsyncpa [#allocation6], 0
    %11 = vsyncpa [#allocation4], 0
    %s12 = scalar_lea.sflag [#allocation4], 1
    %13 = vsyncpa %s12, 0
    loop: start=0, step=1, limit=4
    $region2: #{tpu_custom_call.1} parent=1 // loop_pre_header
      _
    $region3: #{tpu_custom_call.1} parent=1 // loop_header
      %s15 = sphi 0, %s19
      %p16 = scmp.ge.s32.totalorder %s15, 4
      %s25 = sphi 0, %s27
      %s28 = sphi 0, %s25
      %s29 = sphi 0, %s28
      %s45 = sphi 0, %s29
      %s49 = sphi 0, %s49
      %s51 = sphi 0, %s49
      %s52 = sphi 0, %s51
      %s66 = sphi 0, %s52
      %s72 = sphi 0, %s74
      %s75 = sphi 0, %s72
      %s76 = sphi 0, %s75
      %s92 = sphi 0, %s76
    $region4: #{tpu_custom_call.1} parent=1 // loop_header_branch
      %18 = sbr.rel (%p16) target = $region8
    $region5: #{tpu_custom_call.1} parent=1 // loop_body
      %s20 = ssub.s32 %s15, 1
      %s21 = ssub.s32 %s15, 2
      %s22 = sadd.s32 %s15, 1
      %s23 = ssub.s32 %s15, %s22
      %p24 = scmp.eq.s32.totalorder %s23, 0
      %s26 = sadd.s32 %s25, 1
      %s27 = scalar_select %p24, %s25, %s26
      %p30 = pneg %p24
      %p31 = scmp.eq.s32.totalorder %s15, 1
      %p32 = por %p30, %p31
      %p33 = scmp.ne.s32.totalorder %s25, %s28
      %p34 = scmp.eq.s32.totalorder %s15, 0
      %p35 = por %p33, %p34
      %p36 = scmp.ne.s32.totalorder %s25, %s28
      %p37 = scmp.eq.s32.totalorder %s20, 1
      %p38 = por %p36, %p37
      %p39 = scmp.ne.s32.totalorder %s28, %s29
      %p40 = scmp.eq.s32.totalorder %s20, 0
      %p41 = por %p39, %p40
      %p42 = scmp.ne.s32.totalorder %s28, %s29
      %p43 = scmp.eq.s32.totalorder %s21, 1
      %p44 = por %p42, %p43
      %p46 = scmp.ne.s32.totalorder %s29, %s45
      %p47 = scmp.eq.s32.totalorder %s21, 0
      %p48 = por %p46, %p47
      %s50 = sadd.s32 %s49, 1
      %p53 = scmp.eq.s32.totalorder %s15, 1
      %p54 = scmp.ne.s32.totalorder %s49, %s51
      %p55 = scmp.eq.s32.totalorder %s15, 0
      %p56 = por %p54, %p55
      %p57 = scmp.ne.s32.totalorder %s49, %s51
      %p58 = scmp.eq.s32.totalorder %s20, 1
      %p59 = por %p57, %p58
      %p60 = scmp.ne.s32.totalorder %s51, %s52
      %p61 = scmp.eq.s32.totalorder %s20, 0
      %p62 = por %p60, %p61
      %p63 = scmp.ne.s32.totalorder %s51, %s52
      %p64 = scmp.eq.s32.totalorder %s21, 1
      %p65 = por %p63, %p64
      %p67 = scmp.ne.s32.totalorder %s52, %s66
      %p68 = scmp.eq.s32.totalorder %s21, 0
      %p69 = por %p67, %p68
      %s70 = ssub.s32 %s15, %s22
      %p71 = scmp.eq.s32.totalorder %s70, 0
      %s73 = sadd.s32 %s72, 1
      %s74 = scalar_select %p71, %s72, %s73
      %p77 = pneg %p71
      %p78 = scmp.eq.s32.totalorder %s15, 1
      %p79 = por %p77, %p78
      %p80 = scmp.ne.s32.totalorder %s72, %s75
      %p81 = scmp.eq.s32.totalorder %s15, 0
      %p82 = por %p80, %p81
      %p83 = scmp.ne.s32.totalorder %s72, %s75
      %p84 = scmp.eq.s32.totalorder %s20, 1
      %p85 = por %p83, %p84
      %p86 = scmp.ne.s32.totalorder %s75, %s76
      %p87 = scmp.eq.s32.totalorder %s20, 0
      %p88 = por %p86, %p87
      %p89 = scmp.ne.s32.totalorder %s75, %s76
      %p90 = scmp.eq.s32.totalorder %s21, 1
      %p91 = por %p89, %p90
      %p93 = scmp.ne.s32.totalorder %s76, %s92
      %p94 = scmp.eq.s32.totalorder %s21, 0
      %p95 = por %p93, %p94
      %p96 = scmp.le.s32.totalorder 1, %s15
      %p97 = scmp.lt.s32.totalorder %s15, 3
      %p98 = pnand %p96, %p97
      %p99 = pneg %p98
      // Predicated region
      $region9: #{tpu_custom_call.1} parent=5 // pred_check
        _
      $region10: #{tpu_custom_call.1} parent=5 // pred_check_branch
        %101 = sbr.rel (%p98) target = $region12
      $region11: #{tpu_custom_call.1} parent=5 // pred_region
        %s102 = ssub.s32 %s15, 1
        // Predicated region
        $region13: #{tpu_custom_call.1} parent=11 // pred_check
          %p103 = pneg %p62
        $region14: #{tpu_custom_call.1} parent=11 // pred_check_branch
          %105 = sbr.rel (%p103) target = $region16
        $region15: #{tpu_custom_call.1} parent=11 // pred_region
          %s107 = ssub.s32 128, 128
          %108 = vsyncadd [#allocation6], %s107
          %s109 = sshll.u32 [#allocation5], 4
          %s110 = int_to_ptr.vmem [resolvable:$true] %s109
          %115 = dma.hbm_to_vmem [thread:$0]  %s1, 128, %s110, [#allocation6], 64, 64, 4
        $region16: #{tpu_custom_call.1} parent=11 // pred_fallthru
          _
      $region12: #{tpu_custom_call.1} parent=5 // pred_fallthru
        _
      %p116 = scmp.lt.s32.totalorder %s15, 2
      // Predicated region
      $region17: #{tpu_custom_call.1} parent=5 // pred_check
        %p117 = pneg %p116
      $region18: #{tpu_custom_call.1} parent=5 // pred_check_branch
        %119 = sbr.rel (%p117) target = $region20
      $region19: #{tpu_custom_call.1} parent=5 // pred_region
        // Predicated region
        $region21: #{tpu_custom_call.1} parent=19 // pred_check
          %p120 = pneg %p35
        $region22: #{tpu_custom_call.1} parent=19 // pred_check_branch
          %122 = sbr.rel (%p120) target = $region24
        $region23: #{tpu_custom_call.1} parent=19 // pred_region
          %s123 = sand.u32 %s25, 1
          %s124 = scalar_lea.sflag [#allocation3], %s123
          %s125 = sand.u32 %s25, 1
          %s126 = smul.addr %s125, 128
          %s127 = scalar_lea.vmem [#allocation2], %s126
          %s128 = smul.u32 32, %s15
          %s130 = ssub.s32 2048, 2048
          %131 = vsyncadd %s124, %s130
          %s132 = smul.addr %s128, 64
          %s133 = scalar_lea.hbm %s0, %s132
          %s134 = sshll.u32 %s127, 4
          %s135 = int_to_ptr.vmem [resolvable:$true] %s134
          %140 = dma.hbm_to_vmem [thread:$0]  %s133, 2048, %s135, %s124, 64, 64, 4
        $region24: #{tpu_custom_call.1} parent=19 // pred_fallthru
          _
      $region20: #{tpu_custom_call.1} parent=5 // pred_fallthru
        _
      %p141 = scmp.le.s32.totalorder 1, %s15
      %p142 = scmp.lt.s32.totalorder %s15, 3
      %p143 = pnand %p141, %p142
      %p144 = pneg %p143
      // Predicated region
      $region25: #{tpu_custom_call.1} parent=5 // pred_check
        _
      $region26: #{tpu_custom_call.1} parent=5 // pred_check_branch
        %146 = sbr.rel (%p143) target = $region28
      $region27: #{tpu_custom_call.1} parent=5 // pred_region
        %s147 = ssub.s32 %s15, 1
        %s148 = sand.u32 %s28, 1
        %s149 = scalar_lea.sflag [#allocation3], %s148
        %s150 = sand.u32 %s28, 1
        %s151 = smul.addr %s150, 128
        %s152 = scalar_lea.vmem [#allocation2], %s151
        // Predicated region
        $region29: #{tpu_custom_call.1} parent=27 // pred_check
          %p153 = pneg %p41
        $region30: #{tpu_custom_call.1} parent=27 // pred_check_branch
          %155 = sbr.rel (%p153) target = $region32
        $region31: #{tpu_custom_call.1} parent=27 // pred_region
          %156 = dma.done %s149, 2048
        $region32: #{tpu_custom_call.1} parent=27 // pred_fallthru
          _
        // Predicated region
        $region33: #{tpu_custom_call.1} parent=27 // pred_check
          %p157 = pneg %p62
        $region34: #{tpu_custom_call.1} parent=27 // pred_check_branch
          %159 = sbr.rel (%p157) target = $region36
        $region35: #{tpu_custom_call.1} parent=27 // pred_region
          %160 = dma.done [#allocation6], 128
        $region36: #{tpu_custom_call.1} parent=27 // pred_fallthru
          _
        %s161 = sand.u32 %s28, 1
        %s162 = scalar_lea.sflag [#allocation3], %s161
        %s163 = sand.u32 %s28, 1
        %s164 = smul.addr %s163, 128
        %s165 = scalar_lea.vmem [#allocation2], %s164
        %p166 = pneg %p41
        %p167 = pneg %p38
        %p168 = pneg %p62
        %p169 = pneg %p59
        %p170 = pneg %p88
        %p171 = pneg %p85
        %s172 = sand.u32 %s75, 1
        %s173 = scalar_lea.sflag [#allocation4], %s172
        %s174 = sand.u32 %s75, 1
        %s175 = smul.addr %s174, 2
        %s176 = scalar_lea.vmem [#allocation7], %s175
        %s177 = smul.u32 32, %s20
        %v179 = vld [vmem:[%s152] sm:$0xf]
        %v180 = vld [vmem:[%s152 + $0x4] sm:$0xf]
        %v181 = vld [vmem:[%s152 + $0x8] sm:$0xf]
        %v182 = vld [vmem:[%s152 + $0xc] sm:$0xf]
        %v183 = vld [vmem:[%s152 + $0x10] sm:$0xf]
        %v184 = vld [vmem:[%s152 + $0x14] sm:$0xf]
        %v185 = vld [vmem:[%s152 + $0x18] sm:$0xf]
        %v186 = vld [vmem:[%s152 + $0x1c] sm:$0xf]
        %v187 = vld [vmem:[%s152 + $0x20] sm:$0xf]
        %v188 = vld [vmem:[%s152 + $0x24] sm:$0xf]
        %v189 = vld [vmem:[%s152 + $0x28] sm:$0xf]
        %v190 = vld [vmem:[%s152 + $0x2c] sm:$0xf]
        %v191 = vld [vmem:[%s152 + $0x30] sm:$0xf]
        %v192 = vld [vmem:[%s152 + $0x34] sm:$0xf]
        %v193 = vld [vmem:[%s152 + $0x38] sm:$0xf]
        %v194 = vld [vmem:[%s152 + $0x3c] sm:$0xf]
        %v195 = vld [vmem:[%s152 + $0x40] sm:$0xf]
        %v196 = vld [vmem:[%s152 + $0x44] sm:$0xf]
        %v197 = vld [vmem:[%s152 + $0x48] sm:$0xf]
        %v198 = vld [vmem:[%s152 + $0x4c] sm:$0xf]
        %v199 = vld [vmem:[%s152 + $0x50] sm:$0xf]
        %v200 = vld [vmem:[%s152 + $0x54] sm:$0xf]
        %v201 = vld [vmem:[%s152 + $0x58] sm:$0xf]
        %v202 = vld [vmem:[%s152 + $0x5c] sm:$0xf]
        %v203 = vld [vmem:[%s152 + $0x60] sm:$0xf]
        %v204 = vld [vmem:[%s152 + $0x64] sm:$0xf]
        %v205 = vld [vmem:[%s152 + $0x68] sm:$0xf]
        %v206 = vld [vmem:[%s152 + $0x6c] sm:$0xf]
        %v207 = vld [vmem:[%s152 + $0x70] sm:$0xf]
        %v208 = vld [vmem:[%s152 + $0x74] sm:$0xf]
        %v209 = vld [vmem:[%s152 + $0x78] sm:$0xf]
        %v210 = vld [vmem:[%s152 + $0x7c] sm:$0xf]
        %v211 = vld [vmem:[#allocation5] sm:$0xf]
        %v212 = vld [vmem:[#allocation5 + $0x4] sm:$0xf]
        %v245 = vunpack.c.l.b16 %v179
        %v246 = vunpack.c.l.b16 %v180
        %v247 = vunpack.c.l.b16 %v181
        %v248 = vunpack.c.l.b16 %v182
        %v249 = vunpack.c.l.b16 %v183
        %v250 = vunpack.c.l.b16 %v184
        %v251 = vunpack.c.l.b16 %v185
        %v252 = vunpack.c.l.b16 %v186
        %v253 = vunpack.c.l.b16 %v187
        %v254 = vunpack.c.l.b16 %v188
        %v255 = vunpack.c.l.b16 %v189
        %v256 = vunpack.c.l.b16 %v190
        %v257 = vunpack.c.l.b16 %v191
        %v258 = vunpack.c.l.b16 %v192
        %v259 = vunpack.c.l.b16 %v193
        %v260 = vunpack.c.l.b16 %v194
        %v261 = vunpack.c.l.b16 %v195
        %v262 = vunpack.c.l.b16 %v196
        %v263 = vunpack.c.l.b16 %v197
        %v264 = vunpack.c.l.b16 %v198
        %v265 = vunpack.c.l.b16 %v199
        %v266 = vunpack.c.l.b16 %v200
        %v267 = vunpack.c.l.b16 %v201
        %v268 = vunpack.c.l.b16 %v202
        %v269 = vunpack.c.l.b16 %v203
        %v270 = vunpack.c.l.b16 %v204
        %v271 = vunpack.c.l.b16 %v205
        %v272 = vunpack.c.l.b16 %v206
        %v273 = vunpack.c.l.b16 %v207
        %v274 = vunpack.c.l.b16 %v208
        %v275 = vunpack.c.l.b16 %v209
        %v276 = vunpack.c.l.b16 %v210
        %v277 = vpack.c.b16 %v246, %v245
        %v278 = vpack.c.b16 %v248, %v247
        %v279 = vpack.c.b16 %v250, %v249
        %v280 = vpack.c.b16 %v252, %v251
        %v281 = vpack.c.b16 %v254, %v253
        %v282 = vpack.c.b16 %v256, %v255
        %v283 = vpack.c.b16 %v258, %v257
        %v284 = vpack.c.b16 %v260, %v259
        %v285 = vpack.c.b16 %v262, %v261
        %v286 = vpack.c.b16 %v264, %v263
        %v287 = vpack.c.b16 %v266, %v265
        %v288 = vpack.c.b16 %v268, %v267
        %v289 = vpack.c.b16 %v270, %v269
        %v290 = vpack.c.b16 %v272, %v271
        %v291 = vpack.c.b16 %v274, %v273
        %v292 = vpack.c.b16 %v276, %v275
        %v295 = vunpack.c.l.b16 %v211
        %v296 = vunpack.c.l.b16 %v212
        %v297 = vpack.c.b16 %v296, %v295
        %vm299 = vcmask 130048
        %v301 = vsel %vm299, %v277, 0
        %v304 = vsel %vm299, %v278, 0
        %v307 = vsel %vm299, %v279, 0
        %v310 = vsel %vm299, %v280, 0
        %v313 = vsel %vm299, %v281, 0
        %v316 = vsel %vm299, %v282, 0
        %v319 = vsel %vm299, %v283, 0
        %v322 = vsel %vm299, %v284, 0
        %v325 = vsel %vm299, %v285, 0
        %v328 = vsel %vm299, %v286, 0
        %v331 = vsel %vm299, %v287, 0
        %v334 = vsel %vm299, %v288, 0
        %v337 = vsel %vm299, %v289, 0
        %v340 = vsel %vm299, %v290, 0
        %v343 = vsel %vm299, %v291, 0
        %v346 = vsel %vm299, %v292, 0
        %348 = vmatprep.subr.bf16.mxu0 0
        %349 = vmatpush1.bf16.msra.mxu0 %v297
        %350 = vmatprep.subr.bf16.mxu0 0
        %351 = vmatpush1.bf16.msra.mxu0 0
        %352 = vmatprep.subr.bf16.mxu0 0
        %353 = vmatpush1.bf16.msra.mxu0 0
        %354 = vmatprep.subr.bf16.mxu0 0
        %355 = vmatpush1.bf16.msra.mxu0 0
        %356 = vmatprep.subr.bf16.mxu0 0
        %357 = vmatpush1.bf16.msra.mxu0 0
        %358 = vmatprep.subr.bf16.mxu0 0
        %359 = vmatpush1.bf16.msra.mxu0 0
        %360 = vmatprep.subr.bf16.mxu0 0
        %361 = vmatpush1.bf16.msra.mxu0 0
        %362 = vmatprep.subr.bf16.mxu0 0
        %363 = vmatpush1.bf16.msra.mxu0 0
        %364 = vmatprep.subr.bf16.mxu0 0
        %365 = vmatpush1.bf16.msra.mxu0 0
        %366 = vmatprep.subr.bf16.mxu0 0
        %367 = vmatpush1.bf16.msra.mxu0 0
        %368 = vmatprep.subr.bf16.mxu0 0
        %369 = vmatpush1.bf16.msra.mxu0 0
        %370 = vmatprep.subr.bf16.mxu0 0
        %371 = vmatpush1.bf16.msra.mxu0 0
        %372 = vmatprep.subr.bf16.mxu0 0
        %373 = vmatpush1.bf16.msra.mxu0 0
        %374 = vmatprep.subr.bf16.mxu0 0
        %375 = vmatpush1.bf16.msra.mxu0 0
        %376 = vmatprep.subr.bf16.mxu0 0
        %377 = vmatpush1.bf16.msra.mxu0 0
        %378 = vmatprep.subr.bf16.mxu0 0
        %379 = vmatpush1.bf16.msra.mxu0 0
        %380 = vmatprep.mubr.bf16.mxu0 0
        %381 = vmatmul.mubr.bf16.gmra.mrb[0].mxu0 %v301
        %v382 = vpop.f32.mrb[0].mxu0
        %v383 = vadd.f32 0.0, %v382
        %v384 = vpop.f32.mrb[0].mxu0
        %v385 = vpop.f32.mrb[0].mxu0
        %v386 = vadd.f32 0.0, %v385
        %v387 = vpop.f32.mrb[0].mxu0
        %388 = vmatprep.mubr.bf16.mxu0 0
        %389 = vmatmul.mubr.bf16.gmra.mrb[0].mxu0 %v304
        %v390 = vpop.f32.mrb[0].mxu0
        %v391 = vadd.f32 0.0, %v390
        %v392 = vpop.f32.mrb[0].mxu0
        %v393 = vpop.f32.mrb[0].mxu0
        %v394 = vadd.f32 0.0, %v393
        %v395 = vpop.f32.mrb[0].mxu0
        %396 = vmatprep.mubr.bf16.mxu0 0
        %397 = vmatmul.mubr.bf16.gmra.mrb[0].mxu0 %v307
        %v398 = vpop.f32.mrb[0].mxu0
        %v399 = vadd.f32 0.0, %v398
        %v400 = vpop.f32.mrb[0].mxu0
        %v401 = vpop.f32.mrb[0].mxu0
        %v402 = vadd.f32 0.0, %v401
        %v403 = vpop.f32.mrb[0].mxu0
        %404 = vmatprep.mubr.bf16.mxu0 0
        %405 = vmatmul.mubr.bf16.gmra.mrb[0].mxu0 %v310
        %v406 = vpop.f32.mrb[0].mxu0
        %v407 = vadd.f32 0.0, %v406
        %v408 = vpop.f32.mrb[0].mxu0
        %v409 = vpop.f32.mrb[0].mxu0
        %v410 = vadd.f32 0.0, %v409
        %v411 = vpop.f32.mrb[0].mxu0
        %412 = vmatprep.mubr.bf16.mxu0 0
        %413 = vmatmul.mubr.bf16.gmra.mrb[0].mxu0 %v313
        %v414 = vpop.f32.mrb[0].mxu0
        %v415 = vadd.f32 0.0, %v414
        %v416 = vpop.f32.mrb[0].mxu0
        %v417 = vpop.f32.mrb[0].mxu0
        %v418 = vadd.f32 0.0, %v417
        %v419 = vpop.f32.mrb[0].mxu0
        %420 = vmatprep.mubr.bf16.mxu0 0
        %421 = vmatmul.mubr.bf16.gmra.mrb[0].mxu0 %v316
        %v422 = vpop.f32.mrb[0].mxu0
        %v423 = vadd.f32 0.0, %v422
        %v424 = vpop.f32.mrb[0].mxu0
        %v425 = vpop.f32.mrb[0].mxu0
        %v426 = vadd.f32 0.0, %v425
        %v427 = vpop.f32.mrb[0].mxu0
        %428 = vmatprep.mubr.bf16.mxu0 0
        %429 = vmatmul.mubr.bf16.gmra.mrb[0].mxu0 %v319
        %v430 = vpop.f32.mrb[0].mxu0
        %v431 = vadd.f32 0.0, %v430
        %v432 = vpop.f32.mrb[0].mxu0
        %v433 = vpop.f32.mrb[0].mxu0
        %v434 = vadd.f32 0.0, %v433
        %v435 = vpop.f32.mrb[0].mxu0
        %436 = vmatprep.mubr.bf16.mxu0 0
        %437 = vmatmul.mubr.bf16.gmra.mrb[0].mxu0 %v322
        %v438 = vpop.f32.mrb[0].mxu0
        %v439 = vadd.f32 0.0, %v438
        %v440 = vpop.f32.mrb[0].mxu0
        %v441 = vpop.f32.mrb[0].mxu0
        %v442 = vadd.f32 0.0, %v441
        %v443 = vpop.f32.mrb[0].mxu0
        %444 = vmatprep.mubr.bf16.mxu0 0
        %445 = vmatmul.mubr.bf16.gmra.mrb[0].mxu0 %v325
        %v446 = vpop.f32.mrb[0].mxu0
        %v447 = vadd.f32 0.0, %v446
        %v448 = vpop.f32.mrb[0].mxu0
        %v449 = vpop.f32.mrb[0].mxu0
        %v450 = vadd.f32 0.0, %v449
        %v451 = vpop.f32.mrb[0].mxu0
        %452 = vmatprep.mubr.bf16.mxu0 0
        %453 = vmatmul.mubr.bf16.gmra.mrb[0].mxu0 %v328
        %v454 = vpop.f32.mrb[0].mxu0
        %v455 = vadd.f32 0.0, %v454
        %v456 = vpop.f32.mrb[0].mxu0
        %v457 = vpop.f32.mrb[0].mxu0
        %v458 = vadd.f32 0.0, %v457
        %v459 = vpop.f32.mrb[0].mxu0
        %460 = vmatprep.mubr.bf16.mxu0 0
        %461 = vmatmul.mubr.bf16.gmra.mrb[0].mxu0 %v331
        %v462 = vpop.f32.mrb[0].mxu0
        %v463 = vadd.f32 0.0, %v462
        %v464 = vpop.f32.mrb[0].mxu0
        %v465 = vpop.f32.mrb[0].mxu0
        %v466 = vadd.f32 0.0, %v465
        %v467 = vpop.f32.mrb[0].mxu0
        %468 = vmatprep.mubr.bf16.mxu0 0
        %469 = vmatmul.mubr.bf16.gmra.mrb[0].mxu0 %v334
        %v470 = vpop.f32.mrb[0].mxu0
        %v471 = vadd.f32 0.0, %v470
        %v472 = vpop.f32.mrb[0].mxu0
        %v473 = vpop.f32.mrb[0].mxu0
        %v474 = vadd.f32 0.0, %v473
        %v475 = vpop.f32.mrb[0].mxu0
        %476 = vmatprep.mubr.bf16.mxu0 0
        %477 = vmatmul.mubr.bf16.gmra.mrb[0].mxu0 %v337
        %v478 = vpop.f32.mrb[0].mxu0
        %v479 = vadd.f32 0.0, %v478
        %v480 = vpop.f32.mrb[0].mxu0
        %v481 = vpop.f32.mrb[0].mxu0
        %v482 = vadd.f32 0.0, %v481
        %v483 = vpop.f32.mrb[0].mxu0
        %484 = vmatprep.mubr.bf16.mxu0 0
        %485 = vmatmul.mubr.bf16.gmra.mrb[0].mxu0 %v340
        %v486 = vpop.f32.mrb[0].mxu0
        %v487 = vadd.f32 0.0, %v486
        %v488 = vpop.f32.mrb[0].mxu0
        %v489 = vpop.f32.mrb[0].mxu0
        %v490 = vadd.f32 0.0, %v489
        %v491 = vpop.f32.mrb[0].mxu0
        %492 = vmatprep.mubr.bf16.mxu0 0
        %493 = vmatmul.mubr.bf16.gmra.mrb[0].mxu0 %v343
        %v494 = vpop.f32.mrb[0].mxu0
        %v495 = vadd.f32 0.0, %v494
        %v496 = vpop.f32.mrb[0].mxu0
        %v497 = vpop.f32.mrb[0].mxu0
        %v498 = vadd.f32 0.0, %v497
        %v499 = vpop.f32.mrb[0].mxu0
        %500 = vmatprep.mubr.bf16.mxu0 0
        %501 = vmatmul.mubr.bf16.gmra.mrb[0].mxu0 %v346
        %v502 = vpop.f32.mrb[0].mxu0
        %v503 = vadd.f32 0.0, %v502
        %v504 = vpop.f32.mrb[0].mxu0
        %v505 = vpop.f32.mrb[0].mxu0
        %v506 = vadd.f32 0.0, %v505
        %v507 = vpop.f32.mrb[0].mxu0
        %508 = vdwg.mxu0
        %v509 = vadd.f32 %v383, %v386
        %v510 = vadd.f32 %v509, %v391
        %v511 = vadd.f32 %v510, %v394
        %v512 = vadd.f32 %v511, %v399
        %v513 = vadd.f32 %v512, %v402
        %v514 = vadd.f32 %v513, %v407
        %v515 = vadd.f32 %v514, %v410
        %v516 = vadd.f32 %v515, %v415
        %v517 = vadd.f32 %v516, %v418
        %v518 = vadd.f32 %v517, %v423
        %v519 = vadd.f32 %v518, %v426
        %v520 = vadd.f32 %v519, %v431
        %v521 = vadd.f32 %v520, %v434
        %v522 = vadd.f32 %v521, %v439
        %v523 = vadd.f32 %v522, %v442
        %v524 = vadd.f32 %v523, %v447
        %v525 = vadd.f32 %v524, %v450
        %v526 = vadd.f32 %v525, %v455
        %v527 = vadd.f32 %v526, %v458
        %v528 = vadd.f32 %v527, %v463
        %v529 = vadd.f32 %v528, %v466
        %v530 = vadd.f32 %v529, %v471
        %v531 = vadd.f32 %v530, %v474
        %v532 = vadd.f32 %v531, %v479
        %v533 = vadd.f32 %v532, %v482
        %v534 = vadd.f32 %v533, %v487
        %v535 = vadd.f32 %v534, %v490
        %v536 = vadd.f32 %v535, %v495
        %v537 = vadd.f32 %v536, %v498
        %v538 = vadd.f32 %v537, %v503
        %v539 = vadd.f32 %v538, %v506
        %v540 = vrot.slane %v539, 4
        %v541 = vadd.f32 %v539, %v540
        %v542 = vrot.slane %v541, 2
        %v543 = vadd.f32 %v541, %v542
        %v544 = vrot.slane %v543, 1
        %v545 = vadd.f32 %v543, %v544
        %546 = vst [vmem:[%s176] sm:$0x1] %v545
        %v547 = vmul.f32 %v383, %v383
        %v548 = vmul.f32 %v386, %v386
        %v549 = vmul.f32 %v391, %v391
        %v550 = vmul.f32 %v394, %v394
        %v551 = vmul.f32 %v399, %v399
        %v552 = vmul.f32 %v402, %v402
        %v553 = vmul.f32 %v407, %v407
        %v554 = vmul.f32 %v410, %v410
        %v555 = vmul.f32 %v415, %v415
        %v556 = vmul.f32 %v418, %v418
        %v557 = vmul.f32 %v423, %v423
        %v558 = vmul.f32 %v426, %v426
        %v559 = vmul.f32 %v431, %v431
        %v560 = vmul.f32 %v434, %v434
        %v561 = vmul.f32 %v439, %v439
        %v562 = vmul.f32 %v442, %v442
        %v563 = vmul.f32 %v447, %v447
        %v564 = vmul.f32 %v450, %v450
        %v565 = vmul.f32 %v455, %v455
        %v566 = vmul.f32 %v458, %v458
        %v567 = vmul.f32 %v463, %v463
        %v568 = vmul.f32 %v466, %v466
        %v569 = vmul.f32 %v471, %v471
        %v570 = vmul.f32 %v474, %v474
        %v571 = vmul.f32 %v479, %v479
        %v572 = vmul.f32 %v482, %v482
        %v573 = vmul.f32 %v487, %v487
        %v574 = vmul.f32 %v490, %v490
        %v575 = vmul.f32 %v495, %v495
        %v576 = vmul.f32 %v498, %v498
        %v577 = vmul.f32 %v503, %v503
        %v578 = vmul.f32 %v506, %v506
        %v579 = vadd.f32 %v547, %v548
        %v580 = vadd.f32 %v579, %v549
        %v581 = vadd.f32 %v580, %v550
        %v582 = vadd.f32 %v581, %v551
        %v583 = vadd.f32 %v582, %v552
        %v584 = vadd.f32 %v583, %v553
        %v585 = vadd.f32 %v584, %v554
        %v586 = vadd.f32 %v585, %v555
        %v587 = vadd.f32 %v586, %v556
        %v588 = vadd.f32 %v587, %v557
        %v589 = vadd.f32 %v588, %v558
        %v590 = vadd.f32 %v589, %v559
        %v591 = vadd.f32 %v590, %v560
        %v592 = vadd.f32 %v591, %v561
        %v593 = vadd.f32 %v592, %v562
        %v594 = vadd.f32 %v593, %v563
        %v595 = vadd.f32 %v594, %v564
        %v596 = vadd.f32 %v595, %v565
        %v597 = vadd.f32 %v596, %v566
        %v598 = vadd.f32 %v597, %v567
        %v599 = vadd.f32 %v598, %v568
        %v600 = vadd.f32 %v599, %v569
        %v601 = vadd.f32 %v600, %v570
        %v602 = vadd.f32 %v601, %v571
        %v603 = vadd.f32 %v602, %v572
        %v604 = vadd.f32 %v603, %v573
        %v605 = vadd.f32 %v604, %v574
        %v606 = vadd.f32 %v605, %v575
        %v607 = vadd.f32 %v606, %v576
        %v608 = vadd.f32 %v607, %v577
        %v609 = vadd.f32 %v608, %v578
        %v610 = vrot.slane %v609, 4
        %v611 = vadd.f32 %v609, %v610
        %v612 = vrot.slane %v611, 2
        %v613 = vadd.f32 %v611, %v612
        %v614 = vrot.slane %v613, 1
        %v615 = vadd.f32 %v613, %v614
        %616 = vst [vmem:[%s176 + $0x1] sm:$0x1] %v615
        %s617 = sand.u32 %s75, 1
        %s618 = scalar_lea.sflag [#allocation4], %s617
        %s619 = sand.u32 %s75, 1
        %s620 = smul.addr %s619, 2
        %s621 = scalar_lea.vmem [#allocation7], %s620
        // Predicated region
        $region37: #{tpu_custom_call.1} parent=27 // pred_check
          %p622 = pneg %p85
        $region38: #{tpu_custom_call.1} parent=27 // pred_check_branch
          %624 = sbr.rel (%p622) target = $region40
        $region39: #{tpu_custom_call.1} parent=27 // pred_region
          %s626 = ssub.s32 32, 32
          %627 = vsyncadd %s618, %s626
          %s628 = smul.addr %s20, 32
          %s629 = scalar_lea.hbm %s2, %s628
          %s631 = sshll.u32 %s621, 4
          %s632 = int_to_ptr.vmem [resolvable:$true] %s631
          %634 = dma.vmem_to_hbm [thread:$0]  %s632, 32, %s629, %s618
        $region40: #{tpu_custom_call.1} parent=27 // pred_fallthru
          _
      $region28: #{tpu_custom_call.1} parent=5 // pred_fallthru
        _
      %p635 = scmp.le.s32.totalorder 2, %s15
      // Predicated region
      $region41: #{tpu_custom_call.1} parent=5 // pred_check
        %p636 = pneg %p635
      $region42: #{tpu_custom_call.1} parent=5 // pred_check_branch
        %638 = sbr.rel (%p636) target = $region44
      $region43: #{tpu_custom_call.1} parent=5 // pred_region
        %s639 = ssub.s32 %s15, 2
        // Predicated region
        $region45: #{tpu_custom_call.1} parent=43 // pred_check
          %p640 = pneg %p91
        $region46: #{tpu_custom_call.1} parent=43 // pred_check_branch
          %642 = sbr.rel (%p640) target = $region48
        $region47: #{tpu_custom_call.1} parent=43 // pred_region
          %s643 = sand.u32 %s76, 1
          %s644 = scalar_lea.sflag [#allocation4], %s643
          %s645 = sand.u32 %s76, 1
          %s646 = smul.addr %s645, 2
          %s647 = scalar_lea.vmem [#allocation7], %s646
          %648 = dma.done %s644, 32
        $region48: #{tpu_custom_call.1} parent=43 // pred_fallthru
          _
      $region44: #{tpu_custom_call.1} parent=5 // pred_fallthru
        _
    $region6: #{tpu_custom_call.1} parent=1 // loop_footer
      %s19 = sadd.s32 1, %s15
    $region7: #{tpu_custom_call.1} parent=1 // loop_footer_branch
      %14 = sbr.rel target = $region3
    $region8: #{tpu_custom_call.1} parent=1 // loop_exit
      _
    %649 = vsyncpa [#allocation3], 1
    %s650 = scalar_lea.sflag [#allocation3], 1
    %651 = vsyncpa %s650, 1
    %652 = vsyncpa [#allocation6], 1
    %653 = vsyncpa [#allocation4], 1
    %s654 = scalar_lea.sflag [#allocation4], 1
    %655 = vsyncpa %s654, 1

</llo_original>
